<compile_context>
chip_gen: v5e
topology: v5e:2x2
jax: 0.10.0
libtpu: 0.0.40
codegen_flags: <defaults>
</compile_context>

<pallas_src>
import functools

import jax
import jax.numpy as jnp
from jax.experimental import pallas as pl
from jax.experimental.pallas import tpu as pltpu


def _basic_head_kernel(x_ref, wa_ref, wm_ref, b_ref, o_ref, *, n_tiles):
    # x_ref : (tb * n_tiles, C)  rows for tb batch elements, tiles interleaved
    # wa_ref: (C, c_out)         avg-half of Linear weight, pre-scaled by 1/n_tiles
    # wm_ref: (C, c_out)         max-half of Linear weight
    # b_ref : (1, c_out)         bias
    # o_ref : (tb, c_out)
    tb = o_ref.shape[0]

    # Tile reduction as a VPU accumulation over sublane-strided slices:
    # slice t picks row (b*n_tiles + t) for every batch element b in the block.
    r0 = x_ref[pl.ds(0, tb, stride=n_tiles), :]
    s = r0.astype(jnp.float32)          # f32 sum accumulator only
    m = r0                              # running max in native dtype
    for t in range(1, n_tiles):         # n_tiles is small & static -> unrolled
        rt = x_ref[pl.ds(t, tb, stride=n_tiles), :]
        s = s + rt.astype(jnp.float32)
        m = jnp.maximum(m, rt)

    # Linear on [avg || max] without materializing the concat:
    #   y = sum @ (W_avg / n_tiles) + max @ W_max + b
    y = jnp.dot(s, wa_ref[...], preferred_element_type=jnp.float32)
    y = y + jnp.dot(m, wm_ref[...], preferred_element_type=jnp.float32)
    y = y + b_ref[...].astype(jnp.float32)
    o_ref[...] = y.astype(o_ref.dtype)


def basic_head(x, weight, bias, n_tiles, *,
               vmem_budget_bytes=12 * 1024 * 1024):
    """x: (B*n_tiles, C); weight: (c_out, 2*C); bias: (c_out,) -> (B, c_out)."""
    bn, c = x.shape
    assert bn % n_tiles == 0, "batch dim must be a multiple of n_tiles"
    b_sz = bn // n_tiles
    c_out = weight.shape[0]
    assert weight.shape == (c_out, 2 * c)

    # Tiny resident operands prepared in plain JAX (free):
    # fold the 1/n_tiles mean scale into the avg half of the weight.
    inv_n = jnp.asarray(1.0 / n_tiles, dtype=weight.dtype)
    w_avg = weight[:, :c].T * inv_n     # (C, c_out), multiplies the tile-sum
    w_max = weight[:, c:].T             # (C, c_out), multiplies the tile-max
    bias2 = bias.reshape(1, c_out)

    # Batch-tile size: rows (batch elements) per grid step.  Multiple of 8 so
    # the (tb*n_tiles, C) input block and (tb, c_out) output block satisfy the
    # sublane constraint; sized so one input block fits the VMEM byte budget;
    # capped so the grid has >= 2 (usually >= 4) steps when B is large enough.
    itemsize = jnp.dtype(x.dtype).itemsize
    bytes_per_sample = n_tiles * c * itemsize
    rows_by_vmem = max(8, (vmem_budget_bytes // max(bytes_per_sample, 1)) // 8 * 8)

    if b_sz <= 8:
        tb = b_sz                       # single block; shapes equal full dims
    else:
        target = max(8, ((-(-b_sz // 4)) + 7) // 8 * 8)   # aim for ~4 steps
        tb = max(8, min(rows_by_vmem, target))
    grid = (pl.cdiv(b_sz, tb),)         # partial last block: reads of OOB rows
                                        # are harmless (per-row reduction) and
                                        # OOB output rows are masked on write.

    kernel = functools.partial(_basic_head_kernel, n_tiles=n_tiles)

    out = pl.pallas_call(
        kernel,
        out_shape=jax.ShapeDtypeStruct((b_sz, c_out), x.dtype),
        grid_spec=pltpu.PrefetchScalarGridSpec(
            num_scalar_prefetch=0,
            grid=grid,
            in_specs=[
                pl.BlockSpec((tb * n_tiles, c), lambda i: (i, 0)),
                pl.BlockSpec((c, c_out), lambda i: (0, 0)),
                pl.BlockSpec((c, c_out), lambda i: (0, 0)),
                pl.BlockSpec((1, c_out), lambda i: (0, 0)),
            ],
            out_specs=pl.BlockSpec((tb, c_out), lambda i: (i, 0)),
        ),
        compiler_params=pltpu.CompilerParams(
            dimension_semantics=("parallel",),
            vmem_limit_bytes=48 * 1024 * 1024,
        ),
    )(x, w_avg, w_max, bias2)

    return out


if __name__ == "__main__":
    key = jax.random.PRNGKey(0)
    k_x, k_w, k_b = jax.random.split(key, 3)

    # Shapes implied by the module: x is (batch*n_tiles, channels).
    B, n_tiles, C, c_out = 2, 8, 4, 32
    x = jax.random.normal(k_x, (B * n_tiles, C), dtype=jnp.float32)
    weight = jax.random.normal(k_w, (c_out, 2 * C), dtype=jnp.float32) * 0.1
    bias = jax.random.normal(k_b, (c_out,), dtype=jnp.float32) * 0.1

    out = basic_head(x, weight, bias, n_tiles)
    out = jax.block_until_ready(out)

    # Pure-JAX reference with the PyTorch module's exact semantics.
    h_ref = x.reshape(B, n_tiles, C)
    avg = jnp.mean(h_ref, axis=1)
    mx = jnp.max(h_ref, axis=1)
    pooled = jnp.concatenate([avg, mx], axis=1)          # [avg, max] as in torch.cat
    ref = pooled @ weight.T + bias

    assert out.shape == (B, c_out)
    assert jnp.allclose(out, ref, atol=1e-5, rtol=1e-5), (
        float(jnp.max(jnp.abs(out - ref))))

    print("KERNEL_OK")
</pallas_src>

<mosaic_0001>
module attributes {stable_mosaic.version = 11 : i64} {
  func.func @_basic_head_kernel(%arg0: i32, %arg1: memref<16x4xf32, #tpu.memory_space<vmem>>, %arg2: memref<4x32xf32, #tpu.memory_space<vmem>>, %arg3: memref<4x32xf32, #tpu.memory_space<vmem>>, %arg4: memref<1x32xf32, #tpu.memory_space<vmem>>, %arg5: memref<2x32xf32, #tpu.memory_space<vmem>>) attributes {dimension_semantics = [#tpu.dimension_semantics<parallel>], iteration_bounds = array<i64: 1>, scalar_prefetch = 0 : i64, scratch_operands = 0 : i64, tpu.core_type = #tpu.core_type<tc>, window_params = [{transform_indices = @transform_0, window_bounds = array<i64: 16, 4>}, {pipeline_mode = #tpu.pipeline_mode<synchronous>, transform_indices = @transform_1, window_bounds = array<i64: 4, 32>}, {pipeline_mode = #tpu.pipeline_mode<synchronous>, transform_indices = @transform_2, window_bounds = array<i64: 4, 32>}, {pipeline_mode = #tpu.pipeline_mode<synchronous>, transform_indices = @transform_3, window_bounds = array<i64: 1, 32>}, {transform_indices = @transform_4, window_bounds = array<i64: 2, 32>}]} {
    %c0 = arith.constant 0 : index
    %c0_0 = arith.constant 0 : index
    %0 = tpu.strided_load %arg1[%c0, %c0_0] {strides = array<i32: 8, 1>} : memref<16x4xf32, #tpu.memory_space<vmem>>, vector<2x4xf32>
    %c1 = arith.constant 1 : index
    %c0_1 = arith.constant 0 : index
    %1 = tpu.strided_load %arg1[%c1, %c0_1] {strides = array<i32: 8, 1>} : memref<16x4xf32, #tpu.memory_space<vmem>>, vector<2x4xf32>
    %2 = arith.addf %0, %1 : vector<2x4xf32>
    %3 = arith.maximumf %0, %1 : vector<2x4xf32>
    %c2 = arith.constant 2 : index
    %c0_2 = arith.constant 0 : index
    %4 = tpu.strided_load %arg1[%c2, %c0_2] {strides = array<i32: 8, 1>} : memref<16x4xf32, #tpu.memory_space<vmem>>, vector<2x4xf32>
    %5 = arith.addf %2, %4 : vector<2x4xf32>
    %6 = arith.maximumf %3, %4 : vector<2x4xf32>
    %c3 = arith.constant 3 : index
    %c0_3 = arith.constant 0 : index
    %7 = tpu.strided_load %arg1[%c3, %c0_3] {strides = array<i32: 8, 1>} : memref<16x4xf32, #tpu.memory_space<vmem>>, vector<2x4xf32>
    %8 = arith.addf %5, %7 : vector<2x4xf32>
    %9 = arith.maximumf %6, %7 : vector<2x4xf32>
    %c4 = arith.constant 4 : index
    %c0_4 = arith.constant 0 : index
    %10 = tpu.strided_load %arg1[%c4, %c0_4] {strides = array<i32: 8, 1>} : memref<16x4xf32, #tpu.memory_space<vmem>>, vector<2x4xf32>
    %11 = arith.addf %8, %10 : vector<2x4xf32>
    %12 = arith.maximumf %9, %10 : vector<2x4xf32>
    %c5 = arith.constant 5 : index
    %c0_5 = arith.constant 0 : index
    %13 = tpu.strided_load %arg1[%c5, %c0_5] {strides = array<i32: 8, 1>} : memref<16x4xf32, #tpu.memory_space<vmem>>, vector<2x4xf32>
    %14 = arith.addf %11, %13 : vector<2x4xf32>
    %15 = arith.maximumf %12, %13 : vector<2x4xf32>
    %c6 = arith.constant 6 : index
    %c0_6 = arith.constant 0 : index
    %16 = tpu.strided_load %arg1[%c6, %c0_6] {strides = array<i32: 8, 1>} : memref<16x4xf32, #tpu.memory_space<vmem>>, vector<2x4xf32>
    %17 = arith.addf %14, %16 : vector<2x4xf32>
    %18 = arith.maximumf %15, %16 : vector<2x4xf32>
    %c7 = arith.constant 7 : index
    %c0_7 = arith.constant 0 : index
    %19 = tpu.strided_load %arg1[%c7, %c0_7] {strides = array<i32: 8, 1>} : memref<16x4xf32, #tpu.memory_space<vmem>>, vector<2x4xf32>
    %20 = arith.addf %17, %19 : vector<2x4xf32>
    %21 = arith.maximumf %18, %19 : vector<2x4xf32>
    %c0_8 = arith.constant 0 : index
    %c0_9 = arith.constant 0 : index
    %22 = vector.load %arg2[%c0_8, %c0_9] : memref<4x32xf32, #tpu.memory_space<vmem>>, vector<4x32xf32>
    %cst = arith.constant dense<0.000000e+00> : vector<2x32xf32>
    %23 = tpu.matmul %20, %22, %cst {dimension_numbers = #tpu.dot_dimension_numbers<[1], [0], [0], [1], [0, 0, 1, 1], [], []>} : vector<2x4xf32>, vector<4x32xf32>, vector<2x32xf32> -> vector<2x32xf32>
    %c0_10 = arith.constant 0 : index
    %c0_11 = arith.constant 0 : index
    %24 = vector.load %arg3[%c0_10, %c0_11] : memref<4x32xf32, #tpu.memory_space<vmem>>, vector<4x32xf32>
    %cst_12 = arith.constant dense<0.000000e+00> : vector<2x32xf32>
    %25 = tpu.matmul %21, %24, %cst_12 {dimension_numbers = #tpu.dot_dimension_numbers<[1], [0], [0], [1], [0, 0, 1, 1], [], []>} : vector<2x4xf32>, vector<4x32xf32>, vector<2x32xf32> -> vector<2x32xf32>
    %26 = arith.addf %23, %25 : vector<2x32xf32>
    %c0_13 = arith.constant 0 : index
    %c0_14 = arith.constant 0 : index
    %27 = vector.load %arg4[%c0_13, %c0_14] : memref<1x32xf32, #tpu.memory_space<vmem>>, vector<1x32xf32>
    %28 = vector.broadcast %27 : vector<1x32xf32> to vector<2x32xf32>
    %29 = arith.addf %26, %28 : vector<2x32xf32>
    %c0_15 = arith.constant 0 : index
    %c0_16 = arith.constant 0 : index
    %30 = vector.load %arg5[%c0_15, %c0_16] : memref<2x32xf32, #tpu.memory_space<vmem>>, vector<2x32xf32>
    tpu.vector_store %arg5[%c0_15, %c0_16], %29 {strides = array<i32>} : memref<2x32xf32, #tpu.memory_space<vmem>>, vector<2x32xf32>,
    return
  }
  func.func @transform_0(%arg0: i32) -> (i32, i32) {
    %c0_i32 = arith.constant 0 : i32
    %c0_i32_0 = arith.constant 0 : i32
    return %arg0, %c0_i32 : i32, i32
  }
  func.func @transform_1(%arg0: i32) -> (i32, i32) {
    %c0_i32 = arith.constant 0 : i32
    %c0_i32_0 = arith.constant 0 : i32
    %c0_i32_1 = arith.constant 0 : i32
    return %c0_i32, %c0_i32_0 : i32, i32
  }
  func.func @transform_2(%arg0: i32) -> (i32, i32) {
    %c0_i32 = arith.constant 0 : i32
    %c0_i32_0 = arith.constant 0 : i32
    %c0_i32_1 = arith.constant 0 : i32
    return %c0_i32, %c0_i32_0 : i32, i32
  }
  func.func @transform_3(%arg0: i32) -> (i32, i32) {
    %c0_i32 = arith.constant 0 : i32
    %c0_i32_0 = arith.constant 0 : i32
    %c0_i32_1 = arith.constant 0 : i32
    return %c0_i32, %c0_i32_0 : i32, i32
  }
  func.func @transform_4(%arg0: i32) -> (i32, i32) {
    %c0_i32 = arith.constant 0 : i32
    %c0_i32_0 = arith.constant 0 : i32
    return %arg0, %c0_i32 : i32, i32
  }
}

</mosaic_0001>

<llo_original>
// kernel: tpu_custom_call.1
$region0: #{tpu_custom_call.1}
  #allocation0 [shape = 'u32[]', space=smem, size = 0x4, offset = 0x4, fixed_abs, tag = 'smem constant byte address 0x4 - core index']
  #allocation1 [shape = 'u32[72,128]{1,0:T(1,128)}', space=vmem, size = 0x9000, scoped, tag = 'internal scratch']
  %s0 = inlined_call_operand.vmem [shape: f32[16,4], index: 0, kind: input, shape index: {}]
  %s1 = inlined_call_operand.vmem [shape: f32[4,32], index: 1, kind: input, shape index: {}]
  %s2 = inlined_call_operand.vmem [shape: f32[4,32], index: 2, kind: input, shape index: {}]
  %s3 = inlined_call_operand.vmem [shape: f32[1,32], index: 3, kind: input, shape index: {}]
  %s4 = inlined_call_operand.hbm [shape: f32[2,32], index: 4, kind: output, shape index: {}]
  %s5 = sld [smem:[#allocation0]]
  $region26: #{tpu_custom_call.1} parent=0
    _
  %s7 = ssub.s32 1, %s5
  %s8 = scalar_select 0, %s7, %s5
  $region1: #{tpu_custom_call.1} parent=0
    #allocation2 [shape = 'u8[1024]{0}', space=vmem, size = 0x400, scoped, tag = 'output window, operand 0, single buffered']
    #allocation3 [shape = 's32[1]{0}', space=sflag, size = 0x4, scoped, tag = 'scoped memory for tpu_custom_call.1']
    %9 = vsyncpa [#allocation3], 0
    // Predicated region
    $region2: #{tpu_custom_call.1} parent=1 // pred_check
      _
    $region3: #{tpu_custom_call.1} parent=1 // pred_check_branch
      %11 = sbr.rel (0) target = $region5
    $region4: #{tpu_custom_call.1} parent=1 // pred_region
      _
    $region5: #{tpu_custom_call.1} parent=1 // pred_fallthru
      _
    // Predicated region
    $region6: #{tpu_custom_call.1} parent=1 // pred_check
      _
    $region7: #{tpu_custom_call.1} parent=1 // pred_check_branch
      %13 = sbr.rel (0) target = $region9
    $region8: #{tpu_custom_call.1} parent=1 // pred_region
      _
    $region9: #{tpu_custom_call.1} parent=1 // pred_fallthru
      _
    // Predicated region
    $region10: #{tpu_custom_call.1} parent=1 // pred_check
      _
    $region11: #{tpu_custom_call.1} parent=1 // pred_check_branch
      %15 = sbr.rel (0) target = $region13
    $region12: #{tpu_custom_call.1} parent=1 // pred_region
      _
    $region13: #{tpu_custom_call.1} parent=1 // pred_fallthru
      _
    // Predicated region
    $region14: #{tpu_custom_call.1} parent=1 // pred_check
      _
    $region15: #{tpu_custom_call.1} parent=1 // pred_check_branch
      %17 = sbr.rel (0) target = $region17
    $region16: #{tpu_custom_call.1} parent=1 // pred_region
      _
    $region17: #{tpu_custom_call.1} parent=1 // pred_fallthru
      _
    %v18 = vld [vmem:[%s0] ss:$8 sm:$0x3]
    %s19 = scalar_lea.vmem %s0, 1
    %v20 = vld [vmem:[%s19] ss:$8 sm:$0x3]
    %v21 = vadd.f32 %v18, %v20
    %v22 = vmax.f32 %v18, %v20
    %s23 = scalar_lea.vmem %s0, 2
    %v24 = vld [vmem:[%s23] ss:$8 sm:$0x3]
    %v25 = vadd.f32 %v21, %v24
    %v26 = vmax.f32 %v22, %v24
    %s27 = scalar_lea.vmem %s0, 3
    %v28 = vld [vmem:[%s27] ss:$8 sm:$0x3]
    %v29 = vadd.f32 %v25, %v28
    %v30 = vmax.f32 %v26, %v28
    %s31 = scalar_lea.vmem %s0, 4
    %v32 = vld [vmem:[%s31] ss:$8 sm:$0x3]
    %v33 = vadd.f32 %v29, %v32
    %v34 = vmax.f32 %v30, %v32
    %s35 = scalar_lea.vmem %s0, 5
    %v36 = vld [vmem:[%s35] ss:$8 sm:$0x3]
    %v37 = vadd.f32 %v33, %v36
    %v38 = vmax.f32 %v34, %v36
    %s39 = scalar_lea.vmem %s0, 6
    %v40 = vld [vmem:[%s39] ss:$8 sm:$0x3]
    %v41 = vadd.f32 %v37, %v40
    %v42 = vmax.f32 %v38, %v40
    %s43 = scalar_lea.vmem %s0, 7
    %v44 = vld [vmem:[%s43] ss:$8 sm:$0x3]
    %v45 = vadd.f32 %v41, %v44
    %v46 = vmax.f32 %v42, %v44
    %v47 = vld [vmem:[%s1] sm:$0xf]
    %v48 = vld [vmem:[%s2] sm:$0xf]
    %vm49 = vcmask 31744
    %v51 = vsel %vm49, %v46, 0
    %vm53 = vcmask 1043456
    %v55 = vsel %vm53, %v48, 0
    %57 = vmatpush.msra.mxu0 0.0
    %58 = vmatpush.msra.mxu0 0.0
    %59 = vmatpush.msra.mxu0 0.0
    %60 = vmatpush.msra.mxu0 0.0
    %61 = vmatpush.msra.mxu0 0.0
    %62 = vmatpush.msra.mxu0 0.0
    %63 = vmatpush.msra.mxu0 0.0
    %64 = vmatpush.msra.mxu0 0.0
    %65 = vmatpush.msra.mxu0 0.0
    %66 = vmatpush.msra.mxu0 0.0
    %67 = vmatpush.msra.mxu0 0.0
    %68 = vmatpush.msra.mxu0 0.0
    %69 = vmatpush.msra.mxu0 0.0
    %70 = vmatpush.msra.mxu0 0.0
    %71 = vmatpush.msra.mxu0 0.0
    %72 = vmatpush.msra.mxu0 %v55
    %73 = vmatmul.f32.gmra.mxu0 %v51
    %v74 = vpop.f32.mrf.mxu0
    %v75 = vadd.f32 0.0, %v74
    %76 = vdwg.mxu0
    %v78 = vsel %vm49, %v45, 0
    %v81 = vsel %vm53, %v47, 0
    %83 = vmatpush.msra.mxu0 0.0
    %84 = vmatpush.msra.mxu0 0.0
    %85 = vmatpush.msra.mxu0 0.0
    %86 = vmatpush.msra.mxu0 0.0
    %87 = vmatpush.msra.mxu0 0.0
    %88 = vmatpush.msra.mxu0 0.0
    %89 = vmatpush.msra.mxu0 0.0
    %90 = vmatpush.msra.mxu0 0.0
    %91 = vmatpush.msra.mxu0 0.0
    %92 = vmatpush.msra.mxu0 0.0
    %93 = vmatpush.msra.mxu0 0.0
    %94 = vmatpush.msra.mxu0 0.0
    %95 = vmatpush.msra.mxu0 0.0
    %96 = vmatpush.msra.mxu0 0.0
    %97 = vmatpush.msra.mxu0 0.0
    %98 = vmatpush.msra.mxu0 %v81
    %99 = vmatmul.f32.gmra.mxu0 %v78
    %v100 = vpop.f32.mrf.mxu0
    %v101 = vadd.f32 %v75, %v100
    %102 = vdwg.mxu0
    %v103 = vld [vmem:[%s3] sm:$0x1]
    %v105 = vperm.slane %v103, 0
    %v107 = vadd.f32 %v101, %v105
    %vm108 = vcmask 254976
    %109 = vst.msk [vmem:[#allocation2] sm:$0x3] %vm108, %v107
    // Predicated region
    $region18: #{tpu_custom_call.1} parent=1 // pred_check
      _
    $region19: #{tpu_custom_call.1} parent=1 // pred_check_branch
      %111 = sbr.rel (0) target = $region21
    $region20: #{tpu_custom_call.1} parent=1 // pred_region
      %113 = vsyncadd [#allocation3], 0
      %s115 = sshll.u32 [#allocation2], 4
      %s116 = int_to_ptr.vmem [resolvable:$true] %s115
      %s117 = sshll.u32 %s4, 4
      %s118 = int_to_ptr.hbm [resolvable:$true] %s117
      %120 = dma.vmem_to_hbm [thread:$0]  %s116, 32, %s118, [#allocation3]
    $region21: #{tpu_custom_call.1} parent=1 // pred_fallthru
      _
    // Predicated region
    $region22: #{tpu_custom_call.1} parent=1 // pred_check
      _
    $region23: #{tpu_custom_call.1} parent=1 // pred_check_branch
      %122 = sbr.rel (0) target = $region25
    $region24: #{tpu_custom_call.1} parent=1 // pred_region
      %124 = dma.done [#allocation3], 32
    $region25: #{tpu_custom_call.1} parent=1 // pred_fallthru
      _
    %125 = vsyncpa [#allocation3], 1

</llo_original>
